<compile_context>
chip_gen: v7x
topology: tpu7x:2x2x1
jax: 0.10.0
libtpu: 0.0.40
codegen_flags: <defaults>
</compile_context>

<pallas_src>
import functools

import jax
import jax.numpy as jnp
from jax import lax
from jax.experimental import pallas as pl
from jax.experimental.pallas import tpu as pltpu

NEG_INF = -1e30  # large finite negative: avoids inf-inf -> NaN in online softmax


def qkv_proj_kernel(x_ref, wq_ref, wk_ref, wv_ref, q_ref, k_ref, v_ref):
    """Fused per-tile Q/K/V projection.  x: (1, tile, C); weights: (C, D)."""
    xt = x_ref[0]                                                     # (tile, C) bf16
    q_ref[0] = jnp.dot(xt, wq_ref[...],
                       preferred_element_type=jnp.float32).astype(q_ref.dtype)
    k_ref[0] = jnp.dot(xt, wk_ref[...],
                       preferred_element_type=jnp.float32).astype(k_ref.dtype)
    v_ref[0] = jnp.dot(xt, wv_ref[...],
                       preferred_element_type=jnp.float32).astype(v_ref.dtype)


def mha_flash_kernel(q_ref, k_ref, v_ref, wp_ref, bias_ref, o_ref,
                     m_ref, l_ref, acc_ref,
                     *, num_heads, head_size, tq, tk):
    """Grid = (batch, q_tile, kv_tile); kv_tile is the reduction axis.

    q_ref   : (1, tq, D) bf16  pre-scaled queries (D = nH*H)
    k_ref   : (1, tk, D) bf16  keys   (index_map clamped to min(ki, qi))
    v_ref   : (1, tk, D) bf16  values (index_map clamped to min(ki, qi))
    wp_ref  : (D, C)     bf16  output projection weight
    bias_ref: (1, C)     f32   output projection bias
    o_ref   : (1, tq, C)
    scratch : m, l (tq, nH) f32 | acc (tq, D) f32 (lane-dense)
    """
    H = head_size
    nH = num_heads
    qi = pl.program_id(1)
    ki = pl.program_id(2)
    nk = pl.num_programs(2)

    # ---- first kv tile: reset accumulators ----------------------------------
    @pl.when(ki == 0)
    def _():
        m_ref[...] = jnp.full_like(m_ref, NEG_INF)
        l_ref[...] = jnp.zeros_like(l_ref)
        acc_ref[...] = jnp.zeros_like(acc_ref)

    def tile_update(apply_mask):
        q = q_ref[0]                                                  # (tq, D) bf16
        k = k_ref[0]                                                  # (tk, D) bf16
        v = v_ref[0]                                                  # (tk, D) bf16
        m_prev = m_ref[...]                                           # (tq, nH) f32
        l_prev = l_ref[...]                                           # (tq, nH) f32

        if apply_mask:
            # Only the diagonal-straddling tile needs the causal mask.
            row = qi * tq + lax.broadcasted_iota(jnp.int32, (tq, tk), 0)
            col = ki * tk + lax.broadcasted_iota(jnp.int32, (tq, tk), 1)
            mask_add = jnp.where(col <= row, 0.0, NEG_INF).astype(jnp.float32)

        m_cols, l_cols, alpha_cols, pv_cols = [], [], [], []
        # TODO(synk): for num_heads > ~8, process heads in groups of 2-4 to
        # bound vreg pressure from this static unroll.
        for h in range(nH):
            qh = q[:, h * H:(h + 1) * H]                              # (tq, H) bf16
            kh = k[:, h * H:(h + 1) * H]                              # (tk, H) bf16
            vh = v[:, h * H:(h + 1) * H]                              # (tk, H) bf16

            s = lax.dot_general(qh, kh, (((1,), (1,)), ((), ())),
                                preferred_element_type=jnp.float32)   # (tq, tk)
            if apply_mask:
                s = s + mask_add

            mp = m_prev[:, h:h + 1]                                   # (tq, 1)
            mn = jnp.maximum(mp, jnp.max(s, axis=-1, keepdims=True))
            alpha = jnp.exp(mp - mn)                                  # (tq, 1)
            p = jnp.exp(s - mn)                                       # (tq, tk) f32
            ln = alpha * l_prev[:, h:h + 1] + jnp.sum(p, axis=-1, keepdims=True)
            pv = jnp.dot(p.astype(jnp.bfloat16), vh,
                         preferred_element_type=jnp.float32)          # (tq, H)

            m_cols.append(mn)
            l_cols.append(ln)
            alpha_cols.append(jnp.broadcast_to(alpha, (tq, H)))
            pv_cols.append(pv)

        m_ref[...] = jnp.concatenate(m_cols, axis=-1)                 # (tq, nH)
        l_ref[...] = jnp.concatenate(l_cols, axis=-1)                 # (tq, nH)
        alpha_dense = jnp.concatenate(alpha_cols, axis=-1)            # (tq, D)
        pv_dense = jnp.concatenate(pv_cols, axis=-1)                  # (tq, D)
        # Single lane-dense read-modify-write of the accumulator per kv step.
        acc_ref[...] = alpha_dense * acc_ref[...] + pv_dense

    # ---- kv tiles strictly below the diagonal: no mask needed ----------------
    @pl.when(ki < qi)
    def _():
        tile_update(apply_mask=False)

    # ---- diagonal tile: apply causal mask ------------------------------------
    @pl.when(ki == qi)
    def _():
        tile_update(apply_mask=True)

    # (ki > qi: fully above the diagonal -> skipped; its K/V DMA is also elided
    #  by the clamped index_map.)

    # ---- last kv tile: normalize + fused output projection -------------------
    @pl.when(ki == nk - 1)
    def _():
        inv = pl.reciprocal(l_ref[...], approx=True)                  # (tq, nH)
        inv_dense = jnp.concatenate(
            [jnp.broadcast_to(inv[:, h:h + 1], (tq, H)) for h in range(nH)],
            axis=-1)                                                  # (tq, D)
        cat = (acc_ref[...] * inv_dense).astype(jnp.bfloat16)         # (tq, D)
        out = jnp.dot(cat, wp_ref[...], preferred_element_type=jnp.float32)
        out = out + bias_ref[...]                                     # (tq, C)
        o_ref[0] = out.astype(o_ref.dtype)


def multi_head_attention(x, wk, wq, wv, wp, bias, *, block_size=128):
    """x: (B, T, C); wk/wq/wv: (nH, C, H); wp: (nH*H, C); bias: (C,)."""
    B, T, C = x.shape
    nH, _, H = wk.shape
    D = nH * H
    assert wp.shape == (D, C)
    assert bias.shape == (C,)

    # NOTE: reference module scales attention logits by n_embd**-0.5 (C), not
    # head_size**-0.5 -- we match the module.
    scale = float(C) ** (-0.5)

    tile = block_size
    pad_T = ((T + tile - 1) // tile) * tile   # pad T so the tiled path is always taken
    nT = pad_T // tile

    # Fuse per-head weights into lane-dense (C, D) matrices; fold scale into Wq.
    def fuse(w):  # (nH, C, H) -> (C, nH*H); column block h == w[h]
        return jnp.transpose(w, (1, 0, 2)).reshape(C, D)

    wq_f = (fuse(wq) * scale).astype(jnp.bfloat16)
    wk_f = fuse(wk).astype(jnp.bfloat16)
    wv_f = fuse(wv).astype(jnp.bfloat16)
    wp_b = wp.astype(jnp.bfloat16)
    bias2d = bias.reshape(1, C).astype(jnp.float32)

    x_bf = x.astype(jnp.bfloat16)
    if pad_T != T:
        # Zero-padded rows are harmless: causal masking + output slice below.
        x_bf = jnp.pad(x_bf, ((0, 0), (0, pad_T - T), (0, 0)))

    # ---- Prologue: Q/K/V projections computed once per token -----------------
    q, k, v = pl.pallas_call(
        qkv_proj_kernel,
        out_shape=(jax.ShapeDtypeStruct((B, pad_T, D), jnp.bfloat16),) * 3,
        grid_spec=pltpu.PrefetchScalarGridSpec(
            num_scalar_prefetch=0,
            grid=(B, nT),
            in_specs=[
                pl.BlockSpec((1, tile, C), lambda b, i: (b, i, 0)),   # x
                pl.BlockSpec((C, D), lambda b, i: (0, 0)),            # wq (pre-scaled)
                pl.BlockSpec((C, D), lambda b, i: (0, 0)),            # wk
                pl.BlockSpec((C, D), lambda b, i: (0, 0)),            # wv
            ],
            out_specs=[pl.BlockSpec((1, tile, D), lambda b, i: (b, i, 0))] * 3,
        ),
        compiler_params=pltpu.CompilerParams(
            dimension_semantics=("parallel", "parallel")),
    )(x_bf, wq_f, wk_f, wv_f)

    # ---- Flash attention + fused output projection ---------------------------
    kernel = functools.partial(mha_flash_kernel, num_heads=nH, head_size=H,
                               tq=tile, tk=tile)

    out = pl.pallas_call(
        kernel,
        out_shape=jax.ShapeDtypeStruct((B, pad_T, C), x.dtype),
        grid_spec=pltpu.PrefetchScalarGridSpec(
            num_scalar_prefetch=0,
            grid=(B, nT, nT),
            in_specs=[
                pl.BlockSpec((1, tile, D), lambda b, qi, ki: (b, qi, 0)),  # q
                # Clamp to min(ki, qi): causally-skipped kv tiles repeat the
                # previous block index, so Pallas elides their DMA entirely.
                pl.BlockSpec((1, tile, D),
                             lambda b, qi, ki: (b, jnp.minimum(ki, qi), 0)),  # k
                pl.BlockSpec((1, tile, D),
                             lambda b, qi, ki: (b, jnp.minimum(ki, qi), 0)),  # v
                pl.BlockSpec((D, C), lambda b, qi, ki: (0, 0)),              # wp
                pl.BlockSpec((1, C), lambda b, qi, ki: (0, 0)),              # bias
            ],
            out_specs=pl.BlockSpec((1, tile, C), lambda b, qi, ki: (b, qi, 0)),
            scratch_shapes=[
                pltpu.VMEM((tile, nH), jnp.float32),   # running max m (per head)
                pltpu.VMEM((tile, nH), jnp.float32),   # running denom l
                pltpu.VMEM((tile, D), jnp.float32),    # running numerator (lane-dense)
            ]),
        compiler_params=pltpu.CompilerParams(
            dimension_semantics=("parallel", "parallel", "arbitrary")),
    )(q, k, v, wp_b, bias2d)

    if pad_T != T:
        out = out[:, :T, :]
    return out


def reference_mha(x, wk, wq, wv, wp, bias):
    """Pure-JAX reference mirroring the PyTorch forward (eval mode).

    Matmul operands are cast to bf16 with f32 accumulation (and scale folded
    into Wq), matching the kernel's numerics so the tolerance can stay tight.
    """
    B, T, C = x.shape
    nH, _, H = wk.shape
    scale = C ** (-0.5)
    xb = x.astype(jnp.bfloat16)
    tril = jnp.tril(jnp.ones((T, T), dtype=bool))
    outs = []
    for h in range(nH):
        k = jnp.einsum('btc,ch->bth', xb, wk[h].astype(jnp.bfloat16),
                       preferred_element_type=jnp.float32)
        q = jnp.einsum('btc,ch->bth', xb, (wq[h] * scale).astype(jnp.bfloat16),
                       preferred_element_type=jnp.float32)
        v = jnp.einsum('btc,ch->bth', xb, wv[h].astype(jnp.bfloat16),
                       preferred_element_type=jnp.float32)
        wei = jnp.einsum('bqh,bkh->bqk', q.astype(jnp.bfloat16),
                         k.astype(jnp.bfloat16),
                         preferred_element_type=jnp.float32)
        wei = jnp.where(tril, wei, -jnp.inf)
        wei = jax.nn.softmax(wei, axis=-1)
        outs.append(jnp.einsum('bqk,bkh->bqh', wei.astype(jnp.bfloat16),
                               v.astype(jnp.bfloat16),
                               preferred_element_type=jnp.float32))
    cat = jnp.concatenate(outs, axis=-1)                 # (B, T, nH*H)
    out = jnp.einsum('btd,dc->btc', cat.astype(jnp.bfloat16),
                     wp.astype(jnp.bfloat16), preferred_element_type=jnp.float32)
    return out + bias


def _make_params(key, num_heads, C, head_size):
    kk, kq, kv, kp, kb = jax.random.split(key, 5)
    D = num_heads * head_size
    wk = jax.random.normal(kk, (num_heads, C, head_size), jnp.float32) * (C ** -0.5)
    wq = jax.random.normal(kq, (num_heads, C, head_size), jnp.float32) * (C ** -0.5)
    wv = jax.random.normal(kv, (num_heads, C, head_size), jnp.float32) * (C ** -0.5)
    wp = jax.random.normal(kp, (D, C), jnp.float32) * (D ** -0.5)
    bias = jax.random.normal(kb, (C,), jnp.float32) * 0.01
    return wk, wq, wv, wp, bias


if __name__ == "__main__":
    key = jax.random.PRNGKey(0)

    # --- Config 1: module-consistent toy shapes (T padded up to one tile) ----
    B, T, C = 2, 8, 32
    num_heads, head_size = 4, 8
    k1, k2, k3, k4 = jax.random.split(key, 4)
    x = jax.random.normal(k1, (B, T, C), dtype=jnp.float32)
    wk, wq, wv, wp, bias = _make_params(k2, num_heads, C, head_size)

    out = multi_head_attention(x, wk, wq, wv, wp, bias)
    out = jax.block_until_ready(out)
    ref = reference_mha(x, wk, wq, wv, wp, bias)
    assert out.shape == (B, T, C)
    assert jnp.allclose(out, ref, atol=2e-2, rtol=2e-2), "mismatch vs reference (toy config)"

    # --- Config 2: exercises multi-tile flash path, diag masking, DMA elision -
    B2, T2, C2 = 2, 256, 128
    num_heads2, head_size2 = 4, 32
    x2 = jax.random.normal(k3, (B2, T2, C2), dtype=jnp.float32)
    wk2, wq2, wv2, wp2, bias2 = _make_params(k4, num_heads2, C2, head_size2)

    out2 = multi_head_attention(x2, wk2, wq2, wv2, wp2, bias2)
    out2 = jax.block_until_ready(out2)
    ref2 = reference_mha(x2, wk2, wq2, wv2, wp2, bias2)
    assert out2.shape == (B2, T2, C2)
    assert jnp.allclose(out2, ref2, atol=2e-2, rtol=2e-2), "mismatch vs reference (tiled config)"

    print("KERNEL_OK")
</pallas_src>

<mosaic_0001>
module attributes {stable_mosaic.version = 11 : i64} {
  func.func @qkv_proj_kernel(%arg0: i32, %arg1: i32, %arg2: memref<1x128x32xbf16, #tpu.memory_space<vmem>>, %arg3: memref<32x32xbf16, #tpu.memory_space<vmem>>, %arg4: memref<32x32xbf16, #tpu.memory_space<vmem>>, %arg5: memref<32x32xbf16, #tpu.memory_space<vmem>>, %arg6: memref<1x128x32xbf16, #tpu.memory_space<vmem>>, %arg7: memref<1x128x32xbf16, #tpu.memory_space<vmem>>, %arg8: memref<1x128x32xbf16, #tpu.memory_space<vmem>>) attributes {dimension_semantics = [#tpu.dimension_semantics<parallel>, #tpu.dimension_semantics<parallel>], iteration_bounds = array<i64: 2, 1>, scalar_prefetch = 0 : i64, scratch_operands = 0 : i64, tpu.core_type = #tpu.core_type<tc>, window_params = [{transform_indices = @transform_0, window_bounds = array<i64: 1, 128, 32>}, {pipeline_mode = #tpu.pipeline_mode<synchronous>, transform_indices = @transform_1, window_bounds = array<i64: 32, 32>}, {pipeline_mode = #tpu.pipeline_mode<synchronous>, transform_indices = @transform_2, window_bounds = array<i64: 32, 32>}, {pipeline_mode = #tpu.pipeline_mode<synchronous>, transform_indices = @transform_3, window_bounds = array<i64: 32, 32>}, {transform_indices = @transform_4, window_bounds = array<i64: 1, 128, 32>}, {transform_indices = @transform_5, window_bounds = array<i64: 1, 128, 32>}, {transform_indices = @transform_6, window_bounds = array<i64: 1, 128, 32>}]} {
    %c0 = arith.constant 0 : index
    %c0_0 = arith.constant 0 : index
    %c0_1 = arith.constant 0 : index
    %0 = vector.load %arg2[%c0, %c0_0, %c0_1] : memref<1x128x32xbf16, #tpu.memory_space<vmem>>, vector<1x128x32xbf16>
    %1 = vector.shape_cast %0 : vector<1x128x32xbf16> to vector<128x32xbf16>
    %c0_2 = arith.constant 0 : index
    %c0_3 = arith.constant 0 : index
    %2 = vector.load %arg3[%c0_2, %c0_3] : memref<32x32xbf16, #tpu.memory_space<vmem>>, vector<32x32xbf16>
    %cst = arith.constant dense<0.000000e+00> : vector<128x32xf32>
    %3 = tpu.matmul %1, %2, %cst {dimension_numbers = #tpu.dot_dimension_numbers<[1], [0], [0], [1], [0, 0, 1, 1], [], []>} : vector<128x32xbf16>, vector<32x32xbf16>, vector<128x32xf32> -> vector<128x32xf32>
    %4 = arith.truncf %3 : vector<128x32xf32> to vector<128x32xbf16>
    %c0_4 = arith.constant 0 : index
    %c0_5 = arith.constant 0 : index
    %c0_6 = arith.constant 0 : index
    %5 = vector.load %arg6[%c0_4, %c0_5, %c0_6] : memref<1x128x32xbf16, #tpu.memory_space<vmem>>, vector<1x128x32xbf16>
    %6 = vector.shape_cast %5 : vector<1x128x32xbf16> to vector<128x32xbf16>
    %7 = vector.shape_cast %4 : vector<128x32xbf16> to vector<1x128x32xbf16>
    tpu.vector_store %arg6[%c0_4, %c0_5, %c0_6], %7 {strides = array<i32>} : memref<1x128x32xbf16, #tpu.memory_space<vmem>>, vector<1x128x32xbf16>,
    %c0_7 = arith.constant 0 : index
    %c0_8 = arith.constant 0 : index
    %8 = vector.load %arg4[%c0_7, %c0_8] : memref<32x32xbf16, #tpu.memory_space<vmem>>, vector<32x32xbf16>
    %cst_9 = arith.constant dense<0.000000e+00> : vector<128x32xf32>
    %9 = tpu.matmul %1, %8, %cst_9 {dimension_numbers = #tpu.dot_dimension_numbers<[1], [0], [0], [1], [0, 0, 1, 1], [], []>} : vector<128x32xbf16>, vector<32x32xbf16>, vector<128x32xf32> -> vector<128x32xf32>
    %10 = arith.truncf %9 : vector<128x32xf32> to vector<128x32xbf16>
    %c0_10 = arith.constant 0 : index
    %c0_11 = arith.constant 0 : index
    %c0_12 = arith.constant 0 : index
    %11 = vector.load %arg7[%c0_10, %c0_11, %c0_12] : memref<1x128x32xbf16, #tpu.memory_space<vmem>>, vector<1x128x32xbf16>
    %12 = vector.shape_cast %11 : vector<1x128x32xbf16> to vector<128x32xbf16>
    %13 = vector.shape_cast %10 : vector<128x32xbf16> to vector<1x128x32xbf16>
    tpu.vector_store %arg7[%c0_10, %c0_11, %c0_12], %13 {strides = array<i32>} : memref<1x128x32xbf16, #tpu.memory_space<vmem>>, vector<1x128x32xbf16>,
    %c0_13 = arith.constant 0 : index
    %c0_14 = arith.constant 0 : index
    %14 = vector.load %arg5[%c0_13, %c0_14] : memref<32x32xbf16, #tpu.memory_space<vmem>>, vector<32x32xbf16>
    %cst_15 = arith.constant dense<0.000000e+00> : vector<128x32xf32>
    %15 = tpu.matmul %1, %14, %cst_15 {dimension_numbers = #tpu.dot_dimension_numbers<[1], [0], [0], [1], [0, 0, 1, 1], [], []>} : vector<128x32xbf16>, vector<32x32xbf16>, vector<128x32xf32> -> vector<128x32xf32>
    %16 = arith.truncf %15 : vector<128x32xf32> to vector<128x32xbf16>
    %c0_16 = arith.constant 0 : index
    %c0_17 = arith.constant 0 : index
    %c0_18 = arith.constant 0 : index
    %17 = vector.load %arg8[%c0_16, %c0_17, %c0_18] : memref<1x128x32xbf16, #tpu.memory_space<vmem>>, vector<1x128x32xbf16>
    %18 = vector.shape_cast %17 : vector<1x128x32xbf16> to vector<128x32xbf16>
    %19 = vector.shape_cast %16 : vector<128x32xbf16> to vector<1x128x32xbf16>
    tpu.vector_store %arg8[%c0_16, %c0_17, %c0_18], %19 {strides = array<i32>} : memref<1x128x32xbf16, #tpu.memory_space<vmem>>, vector<1x128x32xbf16>,
    return
  }
  func.func @transform_0(%arg0: i32, %arg1: i32) -> (i32, i32, i32) {
    %c0_i32 = arith.constant 0 : i32
    %c0_i32_0 = arith.constant 0 : i32
    return %arg0, %arg1, %c0_i32 : i32, i32, i32
  }
  func.func @transform_1(%arg0: i32, %arg1: i32) -> (i32, i32) {
    %c0_i32 = arith.constant 0 : i32
    %c0_i32_0 = arith.constant 0 : i32
    %c0_i32_1 = arith.constant 0 : i32
    return %c0_i32, %c0_i32_0 : i32, i32
  }
  func.func @transform_2(%arg0: i32, %arg1: i32) -> (i32, i32) {
    %c0_i32 = arith.constant 0 : i32
    %c0_i32_0 = arith.constant 0 : i32
    %c0_i32_1 = arith.constant 0 : i32
    return %c0_i32, %c0_i32_0 : i32, i32
  }
  func.func @transform_3(%arg0: i32, %arg1: i32) -> (i32, i32) {
    %c0_i32 = arith.constant 0 : i32
    %c0_i32_0 = arith.constant 0 : i32
    %c0_i32_1 = arith.constant 0 : i32
    return %c0_i32, %c0_i32_0 : i32, i32
  }
  func.func @transform_4(%arg0: i32, %arg1: i32) -> (i32, i32, i32) {
    %c0_i32 = arith.constant 0 : i32
    %c0_i32_0 = arith.constant 0 : i32
    return %arg0, %arg1, %c0_i32 : i32, i32, i32
  }
  func.func @transform_5(%arg0: i32, %arg1: i32) -> (i32, i32, i32) {
    %c0_i32 = arith.constant 0 : i32
    %c0_i32_0 = arith.constant 0 : i32
    return %arg0, %arg1, %c0_i32 : i32, i32, i32
  }
  func.func @transform_6(%arg0: i32, %arg1: i32) -> (i32, i32, i32) {
    %c0_i32 = arith.constant 0 : i32
    %c0_i32_0 = arith.constant 0 : i32
    return %arg0, %arg1, %c0_i32 : i32, i32, i32
  }
}

</mosaic_0001>

<llo_original>
// kernel: tpu_custom_call.1
$region0: #{tpu_custom_call.1}
  #allocation0 [shape = 'u32[]', space=smem, size = 0x4, offset = 0x4, fixed_abs, tag = 'smem constant byte address 0x4 - core index']
  #allocation1 [shape = 'u32[144,128]{1,0:T(1,128)}', space=vmem, size = 0x12000, scoped, tag = 'internal scratch']
  %s0 = inlined_call_operand.vmem [shape: bf16[2,128,32], index: 0, kind: input, shape index: {}]
  %s1 = inlined_call_operand.vmem [shape: bf16[32,32], index: 1, kind: input, shape index: {}]
  %s2 = inlined_call_operand.vmem [shape: bf16[32,32], index: 2, kind: input, shape index: {}]
  %s3 = inlined_call_operand.vmem [shape: bf16[32,32], index: 3, kind: input, shape index: {}]
  %s4 = inlined_call_operand.vmem [shape: bf16[2,128,32], index: 4, kind: output, shape index: {0}]
  %s5 = inlined_call_operand.vmem [shape: bf16[2,128,32], index: 5, kind: output, shape index: {1}]
  %s6 = inlined_call_operand.vmem [shape: bf16[2,128,32], index: 6, kind: output, shape index: {2}]
  %7 = xla_tuple %s4, %s5, %s6
  %s8 = sld [smem:[#allocation0]]
  $region65: #{tpu_custom_call.1} parent=0
    _
  %s10 = ssub.s32 1, %s8
  %s11 = scalar_select 0, %s10, %s8
  loop: start=0, step=1, limit=4
  $region2: #{tpu_custom_call.1} parent=0 // loop_pre_header
    _
  $region3: #{tpu_custom_call.1} parent=0 // loop_header
    %s13 = sphi 0, %s17
    %p14 = scmp.ge.s32.totalorder %s13, 4
    %s20 = sphi 0, %s32
    %s21 = sphi 0, %s28
    %s22 = sphi 0, %s20
    %s23 = sphi 0, %s21
    %s24 = sphi 0, %s22
    %s25 = sphi 0, %s23
    %s37 = sphi 0, %s39
    %s40 = sphi 0, %s37
    %s41 = sphi 0, %s40
    %s57 = sphi 0, %s41
    %s61 = sphi 0, %s61
    %s63 = sphi 0, %s61
    %s64 = sphi 0, %s63
    %s78 = sphi 0, %s64
    %s82 = sphi 0, %s82
    %s84 = sphi 0, %s82
    %s85 = sphi 0, %s84
    %s99 = sphi 0, %s85
    %s103 = sphi 0, %s103
    %s105 = sphi 0, %s103
    %s106 = sphi 0, %s105
    %s120 = sphi 0, %s106
    %s128 = sphi 0, %s130
    %s131 = sphi 0, %s128
    %s132 = sphi 0, %s131
    %s148 = sphi 0, %s132
    %s156 = sphi 0, %s158
    %s159 = sphi 0, %s156
    %s160 = sphi 0, %s159
    %s176 = sphi 0, %s160
    %s184 = sphi 0, %s186
    %s187 = sphi 0, %s184
    %s188 = sphi 0, %s187
    %s204 = sphi 0, %s188
  $region4: #{tpu_custom_call.1} parent=0 // loop_header_branch
    %16 = sbr.rel (%p14) target = $region8
  $region5: #{tpu_custom_call.1} parent=0 // loop_body
    %s18 = ssub.s32 %s13, 1
    %s19 = ssub.s32 %s13, 2
    %s26 = sadd.s32 1, %s21
    %p27 = scmp.ge.s32.totalorder %s26, 1
    %s28 = scalar_select %p27, 0, %s26
    %s29 = sadd.s32 1, %s20
    %s30 = scalar_select %p27, %s29, %s20
    %p31 = scmp.ge.s32.totalorder %s30, 2
    %s32 = scalar_select %p31, 0, %s30
    %s33 = ssub.s32 %s20, %s32
    %s34 = ssub.s32 %s21, %s28
    %s35 = sor.u32 %s33, %s34
    %p36 = scmp.eq.s32.totalorder %s35, 0
    %s38 = sadd.s32 %s37, 1
    %s39 = scalar_select %p36, %s37, %s38
    %p42 = pneg %p36
    %p43 = scmp.eq.s32.totalorder %s13, 1
    %p44 = por %p42, %p43
    %p45 = scmp.ne.s32.totalorder %s37, %s40
    %p46 = scmp.eq.s32.totalorder %s13, 0
    %p47 = por %p45, %p46
    %p48 = scmp.ne.s32.totalorder %s37, %s40
    %p49 = scmp.eq.s32.totalorder %s18, 1
    %p50 = por %p48, %p49
    %p51 = scmp.ne.s32.totalorder %s40, %s41
    %p52 = scmp.eq.s32.totalorder %s18, 0
    %p53 = por %p51, %p52
    %p54 = scmp.ne.s32.totalorder %s40, %s41
    %p55 = scmp.eq.s32.totalorder %s19, 1
    %p56 = por %p54, %p55
    %p58 = scmp.ne.s32.totalorder %s41, %s57
    %p59 = scmp.eq.s32.totalorder %s19, 0
    %p60 = por %p58, %p59
    %s62 = sadd.s32 %s61, 1
    %p65 = scmp.eq.s32.totalorder %s13, 1
    %p66 = scmp.ne.s32.totalorder %s61, %s63
    %p67 = scmp.eq.s32.totalorder %s13, 0
    %p68 = por %p66, %p67
    %p69 = scmp.ne.s32.totalorder %s61, %s63
    %p70 = scmp.eq.s32.totalorder %s18, 1
    %p71 = por %p69, %p70
    %p72 = scmp.ne.s32.totalorder %s63, %s64
    %p73 = scmp.eq.s32.totalorder %s18, 0
    %p74 = por %p72, %p73
    %p75 = scmp.ne.s32.totalorder %s63, %s64
    %p76 = scmp.eq.s32.totalorder %s19, 1
    %p77 = por %p75, %p76
    %p79 = scmp.ne.s32.totalorder %s64, %s78
    %p80 = scmp.eq.s32.totalorder %s19, 0
    %p81 = por %p79, %p80
    %s83 = sadd.s32 %s82, 1
    %p86 = scmp.eq.s32.totalorder %s13, 1
    %p87 = scmp.ne.s32.totalorder %s82, %s84
    %p88 = scmp.eq.s32.totalorder %s13, 0
    %p89 = por %p87, %p88
    %p90 = scmp.ne.s32.totalorder %s82, %s84
    %p91 = scmp.eq.s32.totalorder %s18, 1
    %p92 = por %p90, %p91
    %p93 = scmp.ne.s32.totalorder %s84, %s85
    %p94 = scmp.eq.s32.totalorder %s18, 0
    %p95 = por %p93, %p94
    %p96 = scmp.ne.s32.totalorder %s84, %s85
    %p97 = scmp.eq.s32.totalorder %s19, 1
    %p98 = por %p96, %p97
    %p100 = scmp.ne.s32.totalorder %s85, %s99
    %p101 = scmp.eq.s32.totalorder %s19, 0
    %p102 = por %p100, %p101
    %s104 = sadd.s32 %s103, 1
    %p107 = scmp.eq.s32.totalorder %s13, 1
    %p108 = scmp.ne.s32.totalorder %s103, %s105
    %p109 = scmp.eq.s32.totalorder %s13, 0
    %p110 = por %p108, %p109
    %p111 = scmp.ne.s32.totalorder %s103, %s105
    %p112 = scmp.eq.s32.totalorder %s18, 1
    %p113 = por %p111, %p112
    %p114 = scmp.ne.s32.totalorder %s105, %s106
    %p115 = scmp.eq.s32.totalorder %s18, 0
    %p116 = por %p114, %p115
    %p117 = scmp.ne.s32.totalorder %s105, %s106
    %p118 = scmp.eq.s32.totalorder %s19, 1
    %p119 = por %p117, %p118
    %p121 = scmp.ne.s32.totalorder %s106, %s120
    %p122 = scmp.eq.s32.totalorder %s19, 0
    %p123 = por %p121, %p122
    %s124 = ssub.s32 %s20, %s32
    %s125 = ssub.s32 %s21, %s28
    %s126 = sor.u32 %s124, %s125
    %p127 = scmp.eq.s32.totalorder %s126, 0
    %s129 = sadd.s32 %s128, 1
    %s130 = scalar_select %p127, %s128, %s129
    %p133 = pneg %p127
    %p134 = scmp.eq.s32.totalorder %s13, 1
    %p135 = por %p133, %p134
    %p136 = scmp.ne.s32.totalorder %s128, %s131
    %p137 = scmp.eq.s32.totalorder %s13, 0
    %p138 = por %p136, %p137
    %p139 = scmp.ne.s32.totalorder %s128, %s131
    %p140 = scmp.eq.s32.totalorder %s18, 1
    %p141 = por %p139, %p140
    %p142 = scmp.ne.s32.totalorder %s131, %s132
    %p143 = scmp.eq.s32.totalorder %s18, 0
    %p144 = por %p142, %p143
    %p145 = scmp.ne.s32.totalorder %s131, %s132
    %p146 = scmp.eq.s32.totalorder %s19, 1
    %p147 = por %p145, %p146
    %p149 = scmp.ne.s32.totalorder %s132, %s148
    %p150 = scmp.eq.s32.totalorder %s19, 0
    %p151 = por %p149, %p150
    %s152 = ssub.s32 %s20, %s32
    %s153 = ssub.s32 %s21, %s28
    %s154 = sor.u32 %s152, %s153
    %p155 = scmp.eq.s32.totalorder %s154, 0
    %s157 = sadd.s32 %s156, 1
    %s158 = scalar_select %p155, %s156, %s157
    %p161 = pneg %p155
    %p162 = scmp.eq.s32.totalorder %s13, 1
    %p163 = por %p161, %p162
    %p164 = scmp.ne.s32.totalorder %s156, %s159
    %p165 = scmp.eq.s32.totalorder %s13, 0
    %p166 = por %p164, %p165
    %p167 = scmp.ne.s32.totalorder %s156, %s159
    %p168 = scmp.eq.s32.totalorder %s18, 1
    %p169 = por %p167, %p168
    %p170 = scmp.ne.s32.totalorder %s159, %s160
    %p171 = scmp.eq.s32.totalorder %s18, 0
    %p172 = por %p170, %p171
    %p173 = scmp.ne.s32.totalorder %s159, %s160
    %p174 = scmp.eq.s32.totalorder %s19, 1
    %p175 = por %p173, %p174
    %p177 = scmp.ne.s32.totalorder %s160, %s176
    %p178 = scmp.eq.s32.totalorder %s19, 0
    %p179 = por %p177, %p178
    %s180 = ssub.s32 %s20, %s32
    %s181 = ssub.s32 %s21, %s28
    %s182 = sor.u32 %s180, %s181
    %p183 = scmp.eq.s32.totalorder %s182, 0
    %s185 = sadd.s32 %s184, 1
    %s186 = scalar_select %p183, %s184, %s185
    %p189 = pneg %p183
    %p190 = scmp.eq.s32.totalorder %s13, 1
    %p191 = por %p189, %p190
    %p192 = scmp.ne.s32.totalorder %s184, %s187
    %p193 = scmp.eq.s32.totalorder %s13, 0
    %p194 = por %p192, %p193
    %p195 = scmp.ne.s32.totalorder %s184, %s187
    %p196 = scmp.eq.s32.totalorder %s18, 1
    %p197 = por %p195, %p196
    %p198 = scmp.ne.s32.totalorder %s187, %s188
    %p199 = scmp.eq.s32.totalorder %s18, 0
    %p200 = por %p198, %p199
    %p201 = scmp.ne.s32.totalorder %s187, %s188
    %p202 = scmp.eq.s32.totalorder %s19, 1
    %p203 = por %p201, %p202
    %p205 = scmp.ne.s32.totalorder %s188, %s204
    %p206 = scmp.eq.s32.totalorder %s19, 0
    %p207 = por %p205, %p206
    %p208 = scmp.le.s32.totalorder 1, %s13
    %p209 = scmp.lt.s32.totalorder %s13, 3
    %p210 = pnand %p208, %p209
    %p211 = pneg %p210
    // Predicated region
    $region9: #{tpu_custom_call.1} parent=5 // pred_check
      _
    $region10: #{tpu_custom_call.1} parent=5 // pred_check_branch
      %213 = sbr.rel (%p210) target = $region12
    $region11: #{tpu_custom_call.1} parent=5 // pred_region
      %s214 = ssub.s32 %s13, 1
      // Predicated region
      $region13: #{tpu_custom_call.1} parent=11 // pred_check
        %p215 = pneg %p74
      $region14: #{tpu_custom_call.1} parent=11 // pred_check_branch
        %217 = sbr.rel (%p215) target = $region16
      $region15: #{tpu_custom_call.1} parent=11 // pred_region
        _
      $region16: #{tpu_custom_call.1} parent=11 // pred_fallthru
        _
      // Predicated region
      $region17: #{tpu_custom_call.1} parent=11 // pred_check
        %p218 = pneg %p95
      $region18: #{tpu_custom_call.1} parent=11 // pred_check_branch
        %220 = sbr.rel (%p218) target = $region20
      $region19: #{tpu_custom_call.1} parent=11 // pred_region
        _
      $region20: #{tpu_custom_call.1} parent=11 // pred_fallthru
        _
      // Predicated region
      $region21: #{tpu_custom_call.1} parent=11 // pred_check
        %p221 = pneg %p116
      $region22: #{tpu_custom_call.1} parent=11 // pred_check_branch
        %223 = sbr.rel (%p221) target = $region24
      $region23: #{tpu_custom_call.1} parent=11 // pred_region
        _
      $region24: #{tpu_custom_call.1} parent=11 // pred_fallthru
        _
    $region12: #{tpu_custom_call.1} parent=5 // pred_fallthru
      _
    %p224 = scmp.lt.s32.totalorder %s13, 2
    // Predicated region
    $region25: #{tpu_custom_call.1} parent=5 // pred_check
      %p225 = pneg %p224
    $region26: #{tpu_custom_call.1} parent=5 // pred_check_branch
      %227 = sbr.rel (%p225) target = $region28
    $region27: #{tpu_custom_call.1} parent=5 // pred_region
      // Predicated region
      $region29: #{tpu_custom_call.1} parent=27 // pred_check
        %p228 = pneg %p47
      $region30: #{tpu_custom_call.1} parent=27 // pred_check_branch
        %230 = sbr.rel (%p228) target = $region32
      $region31: #{tpu_custom_call.1} parent=27 // pred_region
        %s231 = smul.u32 16, %s21
        %p232 = scmp.lt.s32.totalorder %s20, 1
        %s233 = scalar_select %p232, %s20, 1
        %p234 = scmp.lt.s32.totalorder %s231, 15
        %s235 = scalar_select %p234, %s231, 15
        %s236 = smul.addr %s233, 16
        %s237 = sadd.s32 %s235, %s236
        %s238 = smul.addr %s237, 4
        %s239 = scalar_lea.vmem %s0, %s238
        %s240 = smul.u32 16, %s21
      $region32: #{tpu_custom_call.1} parent=27 // pred_fallthru
        _
    $region28: #{tpu_custom_call.1} parent=5 // pred_fallthru
      _
    %p241 = scmp.le.s32.totalorder 1, %s13
    %p242 = scmp.lt.s32.totalorder %s13, 3
    %p243 = pnand %p241, %p242
    %p244 = pneg %p243
    // Predicated region
    $region33: #{tpu_custom_call.1} parent=5 // pred_check
      _
    $region34: #{tpu_custom_call.1} parent=5 // pred_check_branch
      %246 = sbr.rel (%p243) target = $region36
    $region35: #{tpu_custom_call.1} parent=5 // pred_region
      %s247 = ssub.s32 %s13, 1
      %s248 = smul.u32 16, %s23
      %p249 = scmp.lt.s32.totalorder %s22, 1
      %s250 = scalar_select %p249, %s22, 1
      %p251 = scmp.lt.s32.totalorder %s248, 15
      %s252 = scalar_select %p251, %s248, 15
      %s253 = smul.addr %s250, 16
      %s254 = sadd.s32 %s252, %s253
      %s255 = smul.addr %s254, 4
      %s256 = scalar_lea.vmem %s0, %s255
      %p257 = pneg %p53
      %p258 = pneg %p50
      %p259 = pneg %p74
      %p260 = pneg %p71
      %p261 = pneg %p95
      %p262 = pneg %p92
      %p263 = pneg %p116
      %p264 = pneg %p113
      %p265 = pneg %p144
      %p266 = pneg %p141
      %s267 = smul.u32 16, %s23
      %p268 = scmp.lt.s32.totalorder %s22, 1
      %s269 = scalar_select %p268, %s22, 1
      %p270 = scmp.lt.s32.totalorder %s267, 15
      %s271 = scalar_select %p270, %s267, 15
      %s272 = smul.addr %s269, 16
      %s273 = sadd.s32 %s271, %s272
      %s274 = smul.addr %s273, 4
      %s275 = scalar_lea.vmem %s4, %s274
      %p276 = pneg %p172
      %p277 = pneg %p169
      %s278 = smul.u32 16, %s23
      %p279 = scmp.lt.s32.totalorder %s22, 1
      %s280 = scalar_select %p279, %s22, 1
      %p281 = scmp.lt.s32.totalorder %s278, 15
      %s282 = scalar_select %p281, %s278, 15
      %s283 = smul.addr %s280, 16
      %s284 = sadd.s32 %s282, %s283
      %s285 = smul.addr %s284, 4
      %s286 = scalar_lea.vmem %s5, %s285
      %p287 = pneg %p200
      %p288 = pneg %p197
      %s289 = smul.u32 16, %s23
      %p290 = scmp.lt.s32.totalorder %s22, 1
      %s291 = scalar_select %p290, %s22, 1
      %p292 = scmp.lt.s32.totalorder %s289, 15
      %s293 = scalar_select %p292, %s289, 15
      %s294 = smul.addr %s291, 16
      %s295 = sadd.s32 %s293, %s294
      %s296 = smul.addr %s295, 4
      %s297 = scalar_lea.vmem %s6, %s296
      %s298 = smul.u32 16, %s23
      %p299 = scmp.lt.s32.totalorder %s22, 1
      %s300 = scalar_select %p299, %s22, 1
      %p301 = scmp.lt.s32.totalorder %s298, 15
      %s302 = scalar_select %p301, %s298, 15
      %s303 = smul.addr %s300, 16
      %s304 = sadd.s32 %s302, %s303
      %s305 = smul.addr %s304, 4
      %s306 = scalar_lea.vmem %s0, %s305
      %s307 = smul.u32 16, %s23
      %s308 = smul.u32 16, %s23
      %p309 = scmp.lt.s32.totalorder %s22, 1
      %s310 = scalar_select %p309, %s22, 1
      %p311 = scmp.lt.s32.totalorder %s308, 15
      %s312 = scalar_select %p311, %s308, 15
      %s313 = smul.addr %s310, 16
      %s314 = sadd.s32 %s312, %s313
      %s315 = smul.addr %s314, 4
      %s316 = scalar_lea.vmem %s4, %s315
      %s317 = smul.u32 16, %s23
      %s318 = smul.u32 16, %s23
      %p319 = scmp.lt.s32.totalorder %s22, 1
      %s320 = scalar_select %p319, %s22, 1
      %p321 = scmp.lt.s32.totalorder %s318, 15
      %s322 = scalar_select %p321, %s318, 15
      %s323 = smul.addr %s320, 16
      %s324 = sadd.s32 %s322, %s323
      %s325 = smul.addr %s324, 4
      %s326 = scalar_lea.vmem %s5, %s325
      %s327 = smul.u32 16, %s23
      %s328 = smul.u32 16, %s23
      %p329 = scmp.lt.s32.totalorder %s22, 1
      %s330 = scalar_select %p329, %s22, 1
      %p331 = scmp.lt.s32.totalorder %s328, 15
      %s332 = scalar_select %p331, %s328, 15
      %s333 = smul.addr %s330, 16
      %s334 = sadd.s32 %s332, %s333
      %s335 = smul.addr %s334, 4
      %s336 = scalar_lea.vmem %s6, %s335
      %s337 = smul.u32 16, %s23
      %v339 = vld [vmem:[%s306] sm:$0xf]
      %v340 = vld [vmem:[%s306 + $0x4] sm:$0xf]
      %v341 = vld [vmem:[%s306 + $0x8] sm:$0xf]
      %v342 = vld [vmem:[%s306 + $0xc] sm:$0xf]
      %v343 = vld [vmem:[%s306 + $0x10] sm:$0xf]
      %v344 = vld [vmem:[%s306 + $0x14] sm:$0xf]
      %v345 = vld [vmem:[%s306 + $0x18] sm:$0xf]
      %v346 = vld [vmem:[%s306 + $0x1c] sm:$0xf]
      %v347 = vld [vmem:[%s306 + $0x20] sm:$0xf]
      %v348 = vld [vmem:[%s306 + $0x24] sm:$0xf]
      %v349 = vld [vmem:[%s306 + $0x28] sm:$0xf]
      %v350 = vld [vmem:[%s306 + $0x2c] sm:$0xf]
      %v351 = vld [vmem:[%s306 + $0x30] sm:$0xf]
      %v352 = vld [vmem:[%s306 + $0x34] sm:$0xf]
      %v353 = vld [vmem:[%s306 + $0x38] sm:$0xf]
      %v354 = vld [vmem:[%s306 + $0x3c] sm:$0xf]
      %v355 = vld [vmem:[%s1] sm:$0xf]
      %v356 = vld [vmem:[%s1 + $0x4] sm:$0xf]
      %v357 = vld [vmem:[%s1 + $0x8] sm:$0xf]
      %v358 = vld [vmem:[%s1 + $0xc] sm:$0xf]
      %v375 = vunpack.c.l.b16 %v339
      %v376 = vunpack.c.l.b16 %v340
      %v377 = vunpack.c.l.b16 %v341
      %v378 = vunpack.c.l.b16 %v342
      %v379 = vunpack.c.l.b16 %v343
      %v380 = vunpack.c.l.b16 %v344
      %v381 = vunpack.c.l.b16 %v345
      %v382 = vunpack.c.l.b16 %v346
      %v383 = vunpack.c.l.b16 %v347
      %v384 = vunpack.c.l.b16 %v348
      %v385 = vunpack.c.l.b16 %v349
      %v386 = vunpack.c.l.b16 %v350
      %v387 = vunpack.c.l.b16 %v351
      %v388 = vunpack.c.l.b16 %v352
      %v389 = vunpack.c.l.b16 %v353
      %v390 = vunpack.c.l.b16 %v354
      %v391 = vpack.c.b16 %v376, %v375
      %v392 = vpack.c.b16 %v378, %v377
      %v393 = vpack.c.b16 %v380, %v379
      %v394 = vpack.c.b16 %v382, %v381
      %v395 = vpack.c.b16 %v384, %v383
      %v396 = vpack.c.b16 %v386, %v385
      %v397 = vpack.c.b16 %v388, %v387
      %v398 = vpack.c.b16 %v390, %v389
      %v403 = vunpack.c.l.b16 %v355
      %v404 = vunpack.c.l.b16 %v356
      %v405 = vunpack.c.l.b16 %v357
      %v406 = vunpack.c.l.b16 %v358
      %v407 = vpack.c.b16 %v404, %v403
      %v408 = vpack.c.b16 %v406, %v405
      %vm411 = vcmask 261120
      %v413 = vsel %vm411, %v391, 0
      %v416 = vsel %vm411, %v392, 0
      %v419 = vsel %vm411, %v393, 0
      %v422 = vsel %vm411, %v394, 0
      %v425 = vsel %vm411, %v395, 0
      %v428 = vsel %vm411, %v396, 0
      %v431 = vsel %vm411, %v397, 0
      %v434 = vsel %vm411, %v398, 0
      %436 = vmatprep.subr.bf16.mxu0 0
      %437 = vmatpush1.bf16.msra.mxu0 %v407
      %438 = vmatprep.subr.bf16.mxu0 0
      %439 = vmatpush1.bf16.msra.mxu0 %v408
      %440 = vmatprep.subr.bf16.mxu0 0
      %441 = vmatpush1.bf16.msra.mxu0 0
      %442 = vmatprep.subr.bf16.mxu0 0
      %443 = vmatpush1.bf16.msra.mxu0 0
      %444 = vmatprep.subr.bf16.mxu0 0
      %445 = vmatpush1.bf16.msra.mxu0 0
      %446 = vmatprep.subr.bf16.mxu0 0
      %447 = vmatpush1.bf16.msra.mxu0 0
      %448 = vmatprep.subr.bf16.mxu0 0
      %449 = vmatpush1.bf16.msra.mxu0 0
      %450 = vmatprep.subr.bf16.mxu0 0
      %451 = vmatpush1.bf16.msra.mxu0 0
      %452 = vmatprep.subr.bf16.mxu0 0
      %453 = vmatpush1.bf16.msra.mxu0 0
      %454 = vmatprep.subr.bf16.mxu0 0
      %455 = vmatpush1.bf16.msra.mxu0 0
      %456 = vmatprep.subr.bf16.mxu0 0
      %457 = vmatpush1.bf16.msra.mxu0 0
      %458 = vmatprep.subr.bf16.mxu0 0
      %459 = vmatpush1.bf16.msra.mxu0 0
      %460 = vmatprep.subr.bf16.mxu0 0
      %461 = vmatpush1.bf16.msra.mxu0 0
      %462 = vmatprep.subr.bf16.mxu0 0
      %463 = vmatpush1.bf16.msra.mxu0 0
      %464 = vmatprep.subr.bf16.mxu0 0
      %465 = vmatpush1.bf16.msra.mxu0 0
      %466 = vmatprep.subr.bf16.mxu0 0
      %467 = vmatpush1.bf16.msra.mxu0 0
      %468 = vmatprep.mubr.bf16.mxu0 0
      %469 = vmatmul.mubr.bf16.gmra.mrb[0].mxu0 %v413
      %v470 = vpop.f32.mrb[0].mxu0
      %v471 = vadd.f32 0.0, %v470
      %v472 = vpop.f32.mrb[0].mxu0
      %v473 = vpop.f32.mrb[0].mxu0
      %v474 = vadd.f32 0.0, %v473
      %v475 = vpop.f32.mrb[0].mxu0
      %476 = vmatprep.mubr.bf16.mxu0 0
      %477 = vmatmul.mubr.bf16.gmra.mrb[0].mxu0 %v416
      %v478 = vpop.f32.mrb[0].mxu0
      %v479 = vadd.f32 0.0, %v478
      %v480 = vpop.f32.mrb[0].mxu0
      %v481 = vpop.f32.mrb[0].mxu0
      %v482 = vadd.f32 0.0, %v481
      %v483 = vpop.f32.mrb[0].mxu0
      %484 = vmatprep.mubr.bf16.mxu0 0
      %485 = vmatmul.mubr.bf16.gmra.mrb[0].mxu0 %v419
      %v486 = vpop.f32.mrb[0].mxu0
      %v487 = vadd.f32 0.0, %v486
      %v488 = vpop.f32.mrb[0].mxu0
      %v489 = vpop.f32.mrb[0].mxu0
      %v490 = vadd.f32 0.0, %v489
      %v491 = vpop.f32.mrb[0].mxu0
      %492 = vmatprep.mubr.bf16.mxu0 0
      %493 = vmatmul.mubr.bf16.gmra.mrb[0].mxu0 %v422
      %v494 = vpop.f32.mrb[0].mxu0
      %v495 = vadd.f32 0.0, %v494
      %v496 = vpop.f32.mrb[0].mxu0
      %v497 = vpop.f32.mrb[0].mxu0
      %v498 = vadd.f32 0.0, %v497
      %v499 = vpop.f32.mrb[0].mxu0
      %500 = vmatprep.mubr.bf16.mxu0 0
      %501 = vmatmul.mubr.bf16.gmra.mrb[0].mxu0 %v425
      %v502 = vpop.f32.mrb[0].mxu0
      %v503 = vadd.f32 0.0, %v502
      %v504 = vpop.f32.mrb[0].mxu0
      %v505 = vpop.f32.mrb[0].mxu0
      %v506 = vadd.f32 0.0, %v505
      %v507 = vpop.f32.mrb[0].mxu0
      %508 = vmatprep.mubr.bf16.mxu0 0
      %509 = vmatmul.mubr.bf16.gmra.mrb[0].mxu0 %v428
      %v510 = vpop.f32.mrb[0].mxu0
      %v511 = vadd.f32 0.0, %v510
      %v512 = vpop.f32.mrb[0].mxu0
      %v513 = vpop.f32.mrb[0].mxu0
      %v514 = vadd.f32 0.0, %v513
      %v515 = vpop.f32.mrb[0].mxu0
      %516 = vmatprep.mubr.bf16.mxu0 0
      %517 = vmatmul.mubr.bf16.gmra.mrb[0].mxu0 %v431
      %v518 = vpop.f32.mrb[0].mxu0
      %v519 = vadd.f32 0.0, %v518
      %v520 = vpop.f32.mrb[0].mxu0
      %v521 = vpop.f32.mrb[0].mxu0
      %v522 = vadd.f32 0.0, %v521
      %v523 = vpop.f32.mrb[0].mxu0
      %524 = vmatprep.mubr.bf16.mxu0 0
      %525 = vmatmul.mubr.bf16.gmra.mrb[0].mxu0 %v434
      %v526 = vpop.f32.mrb[0].mxu0
      %v527 = vadd.f32 0.0, %v526
      %v528 = vpop.f32.mrb[0].mxu0
      %v529 = vpop.f32.mrb[0].mxu0
      %v530 = vadd.f32 0.0, %v529
      %v531 = vpop.f32.mrb[0].mxu0
      %532 = vdwg.mxu0
      %v533 = vpack.c.bf16 %v474, %v471
      %v534 = vpack.c.bf16 %v482, %v479
      %v535 = vpack.c.bf16 %v490, %v487
      %v536 = vpack.c.bf16 %v498, %v495
      %v537 = vpack.c.bf16 %v506, %v503
      %v538 = vpack.c.bf16 %v514, %v511
      %v539 = vpack.c.bf16 %v522, %v519
      %v540 = vpack.c.bf16 %v530, %v527
      %v549 = vunpack.c.l.b16 %v533
      %v550 = vunpack.c.h.b16 %v533
      %v551 = vunpack.c.l.b16 %v534
      %v552 = vunpack.c.h.b16 %v534
      %v553 = vunpack.c.l.b16 %v535
      %v554 = vunpack.c.h.b16 %v535
      %v555 = vunpack.c.l.b16 %v536
      %v556 = vunpack.c.h.b16 %v536
      %v557 = vunpack.c.l.b16 %v537
      %v558 = vunpack.c.h.b16 %v537
      %v559 = vunpack.c.l.b16 %v538
      %v560 = vunpack.c.h.b16 %v538
      %v561 = vunpack.c.l.b16 %v539
      %v562 = vunpack.c.h.b16 %v539
      %v563 = vunpack.c.l.b16 %v540
      %v564 = vunpack.c.h.b16 %v540
      %v565 = vpack.c.b16 %v549, %v549
      %v566 = vpack.c.b16 %v550, %v550
      %v567 = vpack.c.b16 %v551, %v551
      %v568 = vpack.c.b16 %v552, %v552
      %v569 = vpack.c.b16 %v553, %v553
      %v570 = vpack.c.b16 %v554, %v554
      %v571 = vpack.c.b16 %v555, %v555
      %v572 = vpack.c.b16 %v556, %v556
      %v573 = vpack.c.b16 %v557, %v557
      %v574 = vpack.c.b16 %v558, %v558
      %v575 = vpack.c.b16 %v559, %v559
      %v576 = vpack.c.b16 %v560, %v560
      %v577 = vpack.c.b16 %v561, %v561
      %v578 = vpack.c.b16 %v562, %v562
      %v579 = vpack.c.b16 %v563, %v563
      %v580 = vpack.c.b16 %v564, %v564
      %vm597 = vcmask 257024
      %598 = vst.msk [vmem:[%s316] sm:$0xf] %vm597, %v565
      %599 = vst.msk [vmem:[%s316 + $0x4] sm:$0xf] %vm597, %v566
      %600 = vst.msk [vmem:[%s316 + $0x8] sm:$0xf] %vm597, %v567
      %601 = vst.msk [vmem:[%s316 + $0xc] sm:$0xf] %vm597, %v568
      %602 = vst.msk [vmem:[%s316 + $0x10] sm:$0xf] %vm597, %v569
      %603 = vst.msk [vmem:[%s316 + $0x14] sm:$0xf] %vm597, %v570
      %604 = vst.msk [vmem:[%s316 + $0x18] sm:$0xf] %vm597, %v571
      %605 = vst.msk [vmem:[%s316 + $0x1c] sm:$0xf] %vm597, %v572
      %606 = vst.msk [vmem:[%s316 + $0x20] sm:$0xf] %vm597, %v573
      %607 = vst.msk [vmem:[%s316 + $0x24] sm:$0xf] %vm597, %v574
      %608 = vst.msk [vmem:[%s316 + $0x28] sm:$0xf] %vm597, %v575
      %609 = vst.msk [vmem:[%s316 + $0x2c] sm:$0xf] %vm597, %v576
      %610 = vst.msk [vmem:[%s316 + $0x30] sm:$0xf] %vm597, %v577
      %611 = vst.msk [vmem:[%s316 + $0x34] sm:$0xf] %vm597, %v578
      %612 = vst.msk [vmem:[%s316 + $0x38] sm:$0xf] %vm597, %v579
      %613 = vst.msk [vmem:[%s316 + $0x3c] sm:$0xf] %vm597, %v580
      %v614 = vld [vmem:[%s2] sm:$0xf]
      %v615 = vld [vmem:[%s2 + $0x4] sm:$0xf]
      %v616 = vld [vmem:[%s2 + $0x8] sm:$0xf]
      %v617 = vld [vmem:[%s2 + $0xc] sm:$0xf]
      %v622 = vunpack.c.l.b16 %v614
      %v623 = vunpack.c.l.b16 %v615
      %v624 = vunpack.c.l.b16 %v616
      %v625 = vunpack.c.l.b16 %v617
      %v626 = vpack.c.b16 %v623, %v622
      %v627 = vpack.c.b16 %v625, %v624
      %630 = vmatprep.subr.bf16.mxu0 0
      %631 = vmatpush1.bf16.msra.mxu0 %v626
      %632 = vmatprep.subr.bf16.mxu0 0
      %633 = vmatpush1.bf16.msra.mxu0 %v627
      %634 = vmatprep.subr.bf16.mxu0 0
      %635 = vmatpush1.bf16.msra.mxu0 0
      %636 = vmatprep.subr.bf16.mxu0 0
      %637 = vmatpush1.bf16.msra.mxu0 0
      %638 = vmatprep.subr.bf16.mxu0 0
      %639 = vmatpush1.bf16.msra.mxu0 0
      %640 = vmatprep.subr.bf16.mxu0 0
      %641 = vmatpush1.bf16.msra.mxu0 0
      %642 = vmatprep.subr.bf16.mxu0 0
      %643 = vmatpush1.bf16.msra.mxu0 0
      %644 = vmatprep.subr.bf16.mxu0 0
      %645 = vmatpush1.bf16.msra.mxu0 0
      %646 = vmatprep.subr.bf16.mxu0 0
      %647 = vmatpush1.bf16.msra.mxu0 0
      %648 = vmatprep.subr.bf16.mxu0 0
      %649 = vmatpush1.bf16.msra.mxu0 0
      %650 = vmatprep.subr.bf16.mxu0 0
      %651 = vmatpush1.bf16.msra.mxu0 0
      %652 = vmatprep.subr.bf16.mxu0 0
      %653 = vmatpush1.bf16.msra.mxu0 0
      %654 = vmatprep.subr.bf16.mxu0 0
      %655 = vmatpush1.bf16.msra.mxu0 0
      %656 = vmatprep.subr.bf16.mxu0 0
      %657 = vmatpush1.bf16.msra.mxu0 0
      %658 = vmatprep.subr.bf16.mxu0 0
      %659 = vmatpush1.bf16.msra.mxu0 0
      %660 = vmatprep.subr.bf16.mxu0 0
      %661 = vmatpush1.bf16.msra.mxu0 0
      %662 = vmatprep.mubr.bf16.mxu0 0
      %663 = vmatmul.mubr.bf16.gmra.mrb[0].mxu0 %v413
      %v664 = vpop.f32.mrb[0].mxu0
      %v665 = vadd.f32 0.0, %v664
      %v666 = vpop.f32.mrb[0].mxu0
      %v667 = vpop.f32.mrb[0].mxu0
      %v668 = vadd.f32 0.0, %v667
      %v669 = vpop.f32.mrb[0].mxu0
      %670 = vmatprep.mubr.bf16.mxu0 0
      %671 = vmatmul.mubr.bf16.gmra.mrb[0].mxu0 %v416
      %v672 = vpop.f32.mrb[0].mxu0
      %v673 = vadd.f32 0.0, %v672
      %v674 = vpop.f32.mrb[0].mxu0
      %v675 = vpop.f32.mrb[0].mxu0
      %v676 = vadd.f32 0.0, %v675
      %v677 = vpop.f32.mrb[0].mxu0
      %678 = vmatprep.mubr.bf16.mxu0 0
      %679 = vmatmul.mubr.bf16.gmra.mrb[0].mxu0 %v419
      %v680 = vpop.f32.mrb[0].mxu0
      %v681 = vadd.f32 0.0, %v680
      %v682 = vpop.f32.mrb[0].mxu0
      %v683 = vpop.f32.mrb[0].mxu0
      %v684 = vadd.f32 0.0, %v683
      %v685 = vpop.f32.mrb[0].mxu0
      %686 = vmatprep.mubr.bf16.mxu0 0
      %687 = vmatmul.mubr.bf16.gmra.mrb[0].mxu0 %v422
      %v688 = vpop.f32.mrb[0].mxu0
      %v689 = vadd.f32 0.0, %v688
      %v690 = vpop.f32.mrb[0].mxu0
      %v691 = vpop.f32.mrb[0].mxu0
      %v692 = vadd.f32 0.0, %v691
      %v693 = vpop.f32.mrb[0].mxu0
      %694 = vmatprep.mubr.bf16.mxu0 0
      %695 = vmatmul.mubr.bf16.gmra.mrb[0].mxu0 %v425
      %v696 = vpop.f32.mrb[0].mxu0
      %v697 = vadd.f32 0.0, %v696
      %v698 = vpop.f32.mrb[0].mxu0
      %v699 = vpop.f32.mrb[0].mxu0
      %v700 = vadd.f32 0.0, %v699
      %v701 = vpop.f32.mrb[0].mxu0
      %702 = vmatprep.mubr.bf16.mxu0 0
      %703 = vmatmul.mubr.bf16.gmra.mrb[0].mxu0 %v428
      %v704 = vpop.f32.mrb[0].mxu0
      %v705 = vadd.f32 0.0, %v704
      %v706 = vpop.f32.mrb[0].mxu0
      %v707 = vpop.f32.mrb[0].mxu0
      %v708 = vadd.f32 0.0, %v707
      %v709 = vpop.f32.mrb[0].mxu0
      %710 = vmatprep.mubr.bf16.mxu0 0
      %711 = vmatmul.mubr.bf16.gmra.mrb[0].mxu0 %v431
      %v712 = vpop.f32.mrb[0].mxu0
      %v713 = vadd.f32 0.0, %v712
      %v714 = vpop.f32.mrb[0].mxu0
      %v715 = vpop.f32.mrb[0].mxu0
      %v716 = vadd.f32 0.0, %v715
      %v717 = vpop.f32.mrb[0].mxu0
      %718 = vmatprep.mubr.bf16.mxu0 0
      %719 = vmatmul.mubr.bf16.gmra.mrb[0].mxu0 %v434
      %v720 = vpop.f32.mrb[0].mxu0
      %v721 = vadd.f32 0.0, %v720
      %v722 = vpop.f32.mrb[0].mxu0
      %v723 = vpop.f32.mrb[0].mxu0
      %v724 = vadd.f32 0.0, %v723
      %v725 = vpop.f32.mrb[0].mxu0
      %726 = vdwg.mxu0
      %v727 = vpack.c.bf16 %v668, %v665
      %v728 = vpack.c.bf16 %v676, %v673
      %v729 = vpack.c.bf16 %v684, %v681
      %v730 = vpack.c.bf16 %v692, %v689
      %v731 = vpack.c.bf16 %v700, %v697
      %v732 = vpack.c.bf16 %v708, %v705
      %v733 = vpack.c.bf16 %v716, %v713
      %v734 = vpack.c.bf16 %v724, %v721
      %v743 = vunpack.c.l.b16 %v727
      %v744 = vunpack.c.h.b16 %v727
      %v745 = vunpack.c.l.b16 %v728
      %v746 = vunpack.c.h.b16 %v728
      %v747 = vunpack.c.l.b16 %v729
      %v748 = vunpack.c.h.b16 %v729
      %v749 = vunpack.c.l.b16 %v730
      %v750 = vunpack.c.h.b16 %v730
      %v751 = vunpack.c.l.b16 %v731
      %v752 = vunpack.c.h.b16 %v731
      %v753 = vunpack.c.l.b16 %v732
      %v754 = vunpack.c.h.b16 %v732
      %v755 = vunpack.c.l.b16 %v733
      %v756 = vunpack.c.h.b16 %v733
      %v757 = vunpack.c.l.b16 %v734
      %v758 = vunpack.c.h.b16 %v734
      %v759 = vpack.c.b16 %v743, %v743
      %v760 = vpack.c.b16 %v744, %v744
      %v761 = vpack.c.b16 %v745, %v745
      %v762 = vpack.c.b16 %v746, %v746
      %v763 = vpack.c.b16 %v747, %v747
      %v764 = vpack.c.b16 %v748, %v748
      %v765 = vpack.c.b16 %v749, %v749
      %v766 = vpack.c.b16 %v750, %v750
      %v767 = vpack.c.b16 %v751, %v751
      %v768 = vpack.c.b16 %v752, %v752
      %v769 = vpack.c.b16 %v753, %v753
      %v770 = vpack.c.b16 %v754, %v754
      %v771 = vpack.c.b16 %v755, %v755
      %v772 = vpack.c.b16 %v756, %v756
      %v773 = vpack.c.b16 %v757, %v757
      %v774 = vpack.c.b16 %v758, %v758
      %791 = vst.msk [vmem:[%s326] sm:$0xf] %vm597, %v759
      %792 = vst.msk [vmem:[%s326 + $0x4] sm:$0xf] %vm597, %v760
      %793 = vst.msk [vmem:[%s326 + $0x8] sm:$0xf] %vm597, %v761
      %794 = vst.msk [vmem:[%s326 + $0xc] sm:$0xf] %vm597, %v762
      %795 = vst.msk [vmem:[%s326 + $0x10] sm:$0xf] %vm597, %v763
      %796 = vst.msk [vmem:[%s326 + $0x14] sm:$0xf] %vm597, %v764
      %797 = vst.msk [vmem:[%s326 + $0x18] sm:$0xf] %vm597, %v765
      %798 = vst.msk [vmem:[%s326 + $0x1c] sm:$0xf] %vm597, %v766
      %799 = vst.msk [vmem:[%s326 + $0x20] sm:$0xf] %vm597, %v767
      %800 = vst.msk [vmem:[%s326 + $0x24] sm:$0xf] %vm597, %v768
      %801 = vst.msk [vmem:[%s326 + $0x28] sm:$0xf] %vm597, %v769
      %802 = vst.msk [vmem:[%s326 + $0x2c] sm:$0xf] %vm597, %v770
      %803 = vst.msk [vmem:[%s326 + $0x30] sm:$0xf] %vm597, %v771
      %804 = vst.msk [vmem:[%s326 + $0x34] sm:$0xf] %vm597, %v772
      %805 = vst.msk [vmem:[%s326 + $0x38] sm:$0xf] %vm597, %v773
      %806 = vst.msk [vmem:[%s326 + $0x3c] sm:$0xf] %vm597, %v774
      %v807 = vld [vmem:[%s3] sm:$0xf]
      %v808 = vld [vmem:[%s3 + $0x4] sm:$0xf]
      %v809 = vld [vmem:[%s3 + $0x8] sm:$0xf]
      %v810 = vld [vmem:[%s3 + $0xc] sm:$0xf]
      %v815 = vunpack.c.l.b16 %v807
      %v816 = vunpack.c.l.b16 %v808
      %v817 = vunpack.c.l.b16 %v809
      %v818 = vunpack.c.l.b16 %v810
      %v819 = vpack.c.b16 %v816, %v815
      %v820 = vpack.c.b16 %v818, %v817
      %823 = vmatprep.subr.bf16.mxu0 0
      %824 = vmatpush1.bf16.msra.mxu0 %v819
      %825 = vmatprep.subr.bf16.mxu0 0
      %826 = vmatpush1.bf16.msra.mxu0 %v820
      %827 = vmatprep.subr.bf16.mxu0 0
      %828 = vmatpush1.bf16.msra.mxu0 0
      %829 = vmatprep.subr.bf16.mxu0 0
      %830 = vmatpush1.bf16.msra.mxu0 0
      %831 = vmatprep.subr.bf16.mxu0 0
      %832 = vmatpush1.bf16.msra.mxu0 0
      %833 = vmatprep.subr.bf16.mxu0 0
      %834 = vmatpush1.bf16.msra.mxu0 0
      %835 = vmatprep.subr.bf16.mxu0 0
      %836 = vmatpush1.bf16.msra.mxu0 0
      %837 = vmatprep.subr.bf16.mxu0 0
      %838 = vmatpush1.bf16.msra.mxu0 0
      %839 = vmatprep.subr.bf16.mxu0 0
      %840 = vmatpush1.bf16.msra.mxu0 0
      %841 = vmatprep.subr.bf16.mxu0 0
      %842 = vmatpush1.bf16.msra.mxu0 0
      %843 = vmatprep.subr.bf16.mxu0 0
      %844 = vmatpush1.bf16.msra.mxu0 0
      %845 = vmatprep.subr.bf16.mxu0 0
      %846 = vmatpush1.bf16.msra.mxu0 0
      %847 = vmatprep.subr.bf16.mxu0 0
      %848 = vmatpush1.bf16.msra.mxu0 0
      %849 = vmatprep.subr.bf16.mxu0 0
      %850 = vmatpush1.bf16.msra.mxu0 0
      %851 = vmatprep.subr.bf16.mxu0 0
      %852 = vmatpush1.bf16.msra.mxu0 0
      %853 = vmatprep.subr.bf16.mxu0 0
      %854 = vmatpush1.bf16.msra.mxu0 0
      %855 = vmatprep.mubr.bf16.mxu0 0
      %856 = vmatmul.mubr.bf16.gmra.mrb[0].mxu0 %v413
      %v857 = vpop.f32.mrb[0].mxu0
      %v858 = vadd.f32 0.0, %v857
      %v859 = vpop.f32.mrb[0].mxu0
      %v860 = vpop.f32.mrb[0].mxu0
      %v861 = vadd.f32 0.0, %v860
      %v862 = vpop.f32.mrb[0].mxu0
      %863 = vmatprep.mubr.bf16.mxu0 0
      %864 = vmatmul.mubr.bf16.gmra.mrb[0].mxu0 %v416
      %v865 = vpop.f32.mrb[0].mxu0
      %v866 = vadd.f32 0.0, %v865
      %v867 = vpop.f32.mrb[0].mxu0
      %v868 = vpop.f32.mrb[0].mxu0
      %v869 = vadd.f32 0.0, %v868
      %v870 = vpop.f32.mrb[0].mxu0
      %871 = vmatprep.mubr.bf16.mxu0 0
      %872 = vmatmul.mubr.bf16.gmra.mrb[0].mxu0 %v419
      %v873 = vpop.f32.mrb[0].mxu0
      %v874 = vadd.f32 0.0, %v873
      %v875 = vpop.f32.mrb[0].mxu0
      %v876 = vpop.f32.mrb[0].mxu0
      %v877 = vadd.f32 0.0, %v876
      %v878 = vpop.f32.mrb[0].mxu0
      %879 = vmatprep.mubr.bf16.mxu0 0
      %880 = vmatmul.mubr.bf16.gmra.mrb[0].mxu0 %v422
      %v881 = vpop.f32.mrb[0].mxu0
      %v882 = vadd.f32 0.0, %v881
      %v883 = vpop.f32.mrb[0].mxu0
      %v884 = vpop.f32.mrb[0].mxu0
      %v885 = vadd.f32 0.0, %v884
      %v886 = vpop.f32.mrb[0].mxu0
      %887 = vmatprep.mubr.bf16.mxu0 0
      %888 = vmatmul.mubr.bf16.gmra.mrb[0].mxu0 %v425
      %v889 = vpop.f32.mrb[0].mxu0
      %v890 = vadd.f32 0.0, %v889
      %v891 = vpop.f32.mrb[0].mxu0
      %v892 = vpop.f32.mrb[0].mxu0
      %v893 = vadd.f32 0.0, %v892
      %v894 = vpop.f32.mrb[0].mxu0
      %895 = vmatprep.mubr.bf16.mxu0 0
      %896 = vmatmul.mubr.bf16.gmra.mrb[0].mxu0 %v428
      %v897 = vpop.f32.mrb[0].mxu0
      %v898 = vadd.f32 0.0, %v897
      %v899 = vpop.f32.mrb[0].mxu0
      %v900 = vpop.f32.mrb[0].mxu0
      %v901 = vadd.f32 0.0, %v900
      %v902 = vpop.f32.mrb[0].mxu0
      %903 = vmatprep.mubr.bf16.mxu0 0
      %904 = vmatmul.mubr.bf16.gmra.mrb[0].mxu0 %v431
      %v905 = vpop.f32.mrb[0].mxu0
      %v906 = vadd.f32 0.0, %v905
      %v907 = vpop.f32.mrb[0].mxu0
      %v908 = vpop.f32.mrb[0].mxu0
      %v909 = vadd.f32 0.0, %v908
      %v910 = vpop.f32.mrb[0].mxu0
      %911 = vmatprep.mubr.bf16.mxu0 0
      %912 = vmatmul.mubr.bf16.gmra.mrb[0].mxu0 %v434
      %v913 = vpop.f32.mrb[0].mxu0
      %v914 = vadd.f32 0.0, %v913
      %v915 = vpop.f32.mrb[0].mxu0
      %v916 = vpop.f32.mrb[0].mxu0
      %v917 = vadd.f32 0.0, %v916
      %v918 = vpop.f32.mrb[0].mxu0
      %919 = vdwg.mxu0
      %v920 = vpack.c.bf16 %v861, %v858
      %v921 = vpack.c.bf16 %v869, %v866
      %v922 = vpack.c.bf16 %v877, %v874
      %v923 = vpack.c.bf16 %v885, %v882
      %v924 = vpack.c.bf16 %v893, %v890
      %v925 = vpack.c.bf16 %v901, %v898
      %v926 = vpack.c.bf16 %v909, %v906
      %v927 = vpack.c.bf16 %v917, %v914
      %v936 = vunpack.c.l.b16 %v920
      %v937 = vunpack.c.h.b16 %v920
      %v938 = vunpack.c.l.b16 %v921
      %v939 = vunpack.c.h.b16 %v921
      %v940 = vunpack.c.l.b16 %v922
      %v941 = vunpack.c.h.b16 %v922
      %v942 = vunpack.c.l.b16 %v923
      %v943 = vunpack.c.h.b16 %v923
      %v944 = vunpack.c.l.b16 %v924
      %v945 = vunpack.c.h.b16 %v924
      %v946 = vunpack.c.l.b16 %v925
      %v947 = vunpack.c.h.b16 %v925
      %v948 = vunpack.c.l.b16 %v926
      %v949 = vunpack.c.h.b16 %v926
      %v950 = vunpack.c.l.b16 %v927
      %v951 = vunpack.c.h.b16 %v927
      %v952 = vpack.c.b16 %v936, %v936
      %v953 = vpack.c.b16 %v937, %v937
      %v954 = vpack.c.b16 %v938, %v938
      %v955 = vpack.c.b16 %v939, %v939
      %v956 = vpack.c.b16 %v940, %v940
      %v957 = vpack.c.b16 %v941, %v941
      %v958 = vpack.c.b16 %v942, %v942
      %v959 = vpack.c.b16 %v943, %v943
      %v960 = vpack.c.b16 %v944, %v944
      %v961 = vpack.c.b16 %v945, %v945
      %v962 = vpack.c.b16 %v946, %v946
      %v963 = vpack.c.b16 %v947, %v947
      %v964 = vpack.c.b16 %v948, %v948
      %v965 = vpack.c.b16 %v949, %v949
      %v966 = vpack.c.b16 %v950, %v950
      %v967 = vpack.c.b16 %v951, %v951
      %984 = vst.msk [vmem:[%s336] sm:$0xf] %vm597, %v952
      %985 = vst.msk [vmem:[%s336 + $0x4] sm:$0xf] %vm597, %v953
      %986 = vst.msk [vmem:[%s336 + $0x8] sm:$0xf] %vm597, %v954
      %987 = vst.msk [vmem:[%s336 + $0xc] sm:$0xf] %vm597, %v955
      %988 = vst.msk [vmem:[%s336 + $0x10] sm:$0xf] %vm597, %v956
      %989 = vst.msk [vmem:[%s336 + $0x14] sm:$0xf] %vm597, %v957
      %990 = vst.msk [vmem:[%s336 + $0x18] sm:$0xf] %vm597, %v958
      %991 = vst.msk [vmem:[%s336 + $0x1c] sm:$0xf] %vm597, %v959
      %992 = vst.msk [vmem:[%s336 + $0x20] sm:$0xf] %vm597, %v960
      %993 = vst.msk [vmem:[%s336 + $0x24] sm:$0xf] %vm597, %v961
      %994 = vst.msk [vmem:[%s336 + $0x28] sm:$0xf] %vm597, %v962
      %995 = vst.msk [vmem:[%s336 + $0x2c] sm:$0xf] %vm597, %v963
      %996 = vst.msk [vmem:[%s336 + $0x30] sm:$0xf] %vm597, %v964
      %997 = vst.msk [vmem:[%s336 + $0x34] sm:$0xf] %vm597, %v965
      %998 = vst.msk [vmem:[%s336 + $0x38] sm:$0xf] %vm597, %v966
      %999 = vst.msk [vmem:[%s336 + $0x3c] sm:$0xf] %vm597, %v967
      %s1000 = smul.u32 16, %s23
      %p1001 = scmp.lt.s32.totalorder %s22, 1
      %s1002 = scalar_select %p1001, %s22, 1
      %p1003 = scmp.lt.s32.totalorder %s1000, 15
      %s1004 = scalar_select %p1003, %s1000, 15
      %s1005 = smul.addr %s1002, 16
      %s1006 = sadd.s32 %s1004, %s1005
      %s1007 = smul.addr %s1006, 4
      %s1008 = scalar_lea.vmem %s4, %s1007
      %s1009 = smul.u32 16, %s23
      %p1010 = scmp.lt.s32.totalorder %s22, 1
      %s1011 = scalar_select %p1010, %s22, 1
      %p1012 = scmp.lt.s32.totalorder %s1009, 15
      %s1013 = scalar_select %p1012, %s1009, 15
      %s1014 = smul.addr %s1011, 16
      %s1015 = sadd.s32 %s1013, %s1014
      %s1016 = smul.addr %s1015, 4
      %s1017 = scalar_lea.vmem %s5, %s1016
      %s1018 = smul.u32 16, %s23
      %p1019 = scmp.lt.s32.totalorder %s22, 1
      %s1020 = scalar_select %p1019, %s22, 1
      %p1021 = scmp.lt.s32.totalorder %s1018, 15
      %s1022 = scalar_select %p1021, %s1018, 15
      %s1023 = smul.addr %s1020, 16
      %s1024 = sadd.s32 %s1022, %s1023
      %s1025 = smul.addr %s1024, 4
      %s1026 = scalar_lea.vmem %s6, %s1025
      // Predicated region
      $region37: #{tpu_custom_call.1} parent=35 // pred_check
        %p1027 = pneg %p141
      $region38: #{tpu_custom_call.1} parent=35 // pred_check_branch
        %1029 = sbr.rel (%p1027) target = $region40
      $region39: #{tpu_custom_call.1} parent=35 // pred_region
        %s1030 = smul.u32 16, %s23
      $region40: #{tpu_custom_call.1} parent=35 // pred_fallthru
        _
      // Predicated region
      $region41: #{tpu_custom_call.1} parent=35 // pred_check
        %p1031 = pneg %p169
      $region42: #{tpu_custom_call.1} parent=35 // pred_check_branch
        %1033 = sbr.rel (%p1031) target = $region44
      $region43: #{tpu_custom_call.1} parent=35 // pred_region
        %s1034 = smul.u32 16, %s23
      $region44: #{tpu_custom_call.1} parent=35 // pred_fallthru
        _
      // Predicated region
      $region45: #{tpu_custom_call.1} parent=35 // pred_check
        %p1035 = pneg %p197
      $region46: #{tpu_custom_call.1} parent=35 // pred_check_branch
        %1037 = sbr.rel (%p1035) target = $region48
      $region47: #{tpu_custom_call.1} parent=35 // pred_region
        %s1038 = smul.u32 16, %s23
      $region48: #{tpu_custom_call.1} parent=35 // pred_fallthru
        _
    $region36: #{tpu_custom_call.1} parent=5 // pred_fallthru
      _
    %p1039 = scmp.le.s32.totalorder 2, %s13
    // Predicated region
    $region49: #{tpu_custom_call.1} parent=5 // pred_check
      %p1040 = pneg %p1039
    $region50: #{tpu_custom_call.1} parent=5 // pred_check_branch
      %1042 = sbr.rel (%p1040) target = $region52
    $region51: #{tpu_custom_call.1} parent=5 // pred_region
      %s1043 = ssub.s32 %s13, 2
      // Predicated region
      $region53: #{tpu_custom_call.1} parent=51 // pred_check
        %p1044 = pneg %p147
      $region54: #{tpu_custom_call.1} parent=51 // pred_check_branch
        %1046 = sbr.rel (%p1044) target = $region56
      $region55: #{tpu_custom_call.1} parent=51 // pred_region
        %s1047 = smul.u32 16, %s25
        %p1048 = scmp.lt.s32.totalorder %s24, 1
        %s1049 = scalar_select %p1048, %s24, 1
        %p1050 = scmp.lt.s32.totalorder %s1047, 15
        %s1051 = scalar_select %p1050, %s1047, 15
        %s1052 = smul.addr %s1049, 16
        %s1053 = sadd.s32 %s1051, %s1052
        %s1054 = smul.addr %s1053, 4
        %s1055 = scalar_lea.vmem %s4, %s1054
      $region56: #{tpu_custom_call.1} parent=51 // pred_fallthru
        _
      // Predicated region
      $region57: #{tpu_custom_call.1} parent=51 // pred_check
        %p1056 = pneg %p175
      $region58: #{tpu_custom_call.1} parent=51 // pred_check_branch
        %1058 = sbr.rel (%p1056) target = $region60
      $region59: #{tpu_custom_call.1} parent=51 // pred_region
        %s1059 = smul.u32 16, %s25
        %p1060 = scmp.lt.s32.totalorder %s24, 1
        %s1061 = scalar_select %p1060, %s24, 1
        %p1062 = scmp.lt.s32.totalorder %s1059, 15
        %s1063 = scalar_select %p1062, %s1059, 15
        %s1064 = smul.addr %s1061, 16
        %s1065 = sadd.s32 %s1063, %s1064
        %s1066 = smul.addr %s1065, 4
        %s1067 = scalar_lea.vmem %s5, %s1066
      $region60: #{tpu_custom_call.1} parent=51 // pred_fallthru
        _
      // Predicated region
      $region61: #{tpu_custom_call.1} parent=51 // pred_check
        %p1068 = pneg %p203
      $region62: #{tpu_custom_call.1} parent=51 // pred_check_branch
        %1070 = sbr.rel (%p1068) target = $region64
      $region63: #{tpu_custom_call.1} parent=51 // pred_region
        %s1071 = smul.u32 16, %s25
        %p1072 = scmp.lt.s32.totalorder %s24, 1
        %s1073 = scalar_select %p1072, %s24, 1
        %p1074 = scmp.lt.s32.totalorder %s1071, 15
        %s1075 = scalar_select %p1074, %s1071, 15
        %s1076 = smul.addr %s1073, 16
        %s1077 = sadd.s32 %s1075, %s1076
        %s1078 = smul.addr %s1077, 4
        %s1079 = scalar_lea.vmem %s6, %s1078
      $region64: #{tpu_custom_call.1} parent=51 // pred_fallthru
        _
    $region52: #{tpu_custom_call.1} parent=5 // pred_fallthru
      _
  $region6: #{tpu_custom_call.1} parent=0 // loop_footer
    %s17 = sadd.s32 1, %s13
  $region7: #{tpu_custom_call.1} parent=0 // loop_footer_branch
    %12 = sbr.rel target = $region3
  $region8: #{tpu_custom_call.1} parent=0 // loop_exit
    _

</llo_original>
